<compile_context>
chip_gen: v7x
topology: tpu7x:2x2x1
jax: 0.10.0
libtpu: 0.0.40
codegen_flags: <defaults>
</compile_context>

<pallas_src>
import jax
import jax.numpy as jnp
from jax.experimental import pallas as pl
from jax.experimental.pallas import tpu as pltpu

SIM_THRESH = 0.9
BN_EPS = 1e-5


def _vmem():
    # whole-array block resident in VMEM (shapes here are tiny; no tiling needed)
    return pl.BlockSpec(memory_space=pltpu.MemorySpace.VMEM)


# ---------------------------------------------------------------------------
# Single fused kernel: L_hat build + lg ChebConv layers (+ReLU) +
#                      (JK concat ∘ Linear1) as in-loop split-K accumulation +
#                      ReLU/BN(folded)/Linear2/softmax head.
# ---------------------------------------------------------------------------
def _make_gcn_kernel(lg):
    def kernel(x_ref, *args):
        wcheb_refs = args[:lg]                                       # (3, Fin_i, hgc) bf16
        (w1_ref, b1_ref, bnsc_ref, bnsh_ref,
         w2_ref, b2_ref, out_ref) = args[lg:]

        # ---- graph: cosine similarity > 0.9, self-loops removed, 'sym' norm ----
        # TODO(synk): `get_feature_graph` is undefined in the reference module;
        #             cosine similarity is assumed here.
        x = x_ref[...]                                               # (N, F) f32
        sq = jnp.sum(x * x, axis=-1, keepdims=True)                  # (N, 1)
        xn = x * jnp.where(sq > 0.0, jax.lax.rsqrt(sq), 0.0)         # row-normalized, f32
        s = jnp.dot(xn, xn.T, preferred_element_type=jnp.float32)    # (N, N) cosine sim, f32
        n = s.shape[0]
        row = jax.lax.broadcasted_iota(jnp.int32, (n, n), 0)
        col = jax.lax.broadcasted_iota(jnp.int32, (n, n), 1)
        a = jnp.where((s > SIM_THRESH) & (row != col), s, 0.0)       # thresholded, no self-loops
        deg_r = jnp.sum(a, axis=1, keepdims=True)                    # (N, 1)
        deg_c = jnp.sum(a, axis=0, keepdims=True)                    # (1, N)  (A symmetric)
        dinv_r = jnp.where(deg_r > 0.0, jax.lax.rsqrt(deg_r), 0.0)
        dinv_c = jnp.where(deg_c > 0.0, jax.lax.rsqrt(deg_c), 0.0)
        # ChebConv 'sym', lambda_max=2  =>  L_hat = L - I = -D^{-1/2} A D^{-1/2}
        lhat = (-(dinv_r * a * dinv_c)).astype(jnp.bfloat16)         # resident bf16 MXU operand

        # ---- lg x ChebConv(K=3) + fused ReLU; classifier Linear1 accumulated on the fly ----
        h_bf = x.astype(jnp.bfloat16)                                # T0 input of layer 0
        hc = None                                                    # (N, 256) f32 accumulator
        for i in range(lg):
            wc = wcheb_refs[i]                                       # (3, Fin, hgc)
            tx0 = h_bf
            tx1 = jnp.dot(lhat, tx0, preferred_element_type=jnp.float32)
            tx1_bf = tx1.astype(jnp.bfloat16)
            tx2p = jnp.dot(lhat, tx1_bf, preferred_element_type=jnp.float32)   # L @ T1
            # Recurrence constants (2*, -T0) folded into the weights on host:
            #   out = T0 @ (W0 - W2) + T1 @ W1 + (L @ T1) @ (2 * W2)
            out = (jnp.dot(tx0, wc[0], preferred_element_type=jnp.float32)
                   + jnp.dot(tx1_bf, wc[1], preferred_element_type=jnp.float32)
                   + jnp.dot(tx2p.astype(jnp.bfloat16), wc[2],
                             preferred_element_type=jnp.float32))
            # TODO(synk): inter-layer F.dropout is a no-op in inference mode;
            #             training-mode dropout / batch-stat BN are not implemented.
            h_bf = jnp.maximum(out, 0.0).astype(jnp.bfloat16)        # fused ReLU (f32 VPU)
            # JK-concat followed by Linear1  ==  split-K sum of per-layer blocks:
            contrib = jnp.dot(h_bf, w1_ref[i], preferred_element_type=jnp.float32)
            hc = contrib if hc is None else hc + contrib

        # ---- classifier tail: +b1 -> ReLU -> folded BN -> Linear -> softmax ----
        hc = jnp.maximum(hc + b1_ref[...], 0.0)
        hc = hc * bnsc_ref[...] + bnsh_ref[...]                      # eval-stat BN as scale/shift
        logits = jnp.dot(hc.astype(jnp.bfloat16), w2_ref[...],
                         preferred_element_type=jnp.float32) + b2_ref[...]
        m = jnp.max(logits, axis=-1, keepdims=True)
        e = jnp.exp(logits - m)
        denom = jnp.sum(e, axis=-1, keepdims=True)
        out_ref[...] = e * pl.reciprocal(denom, approx=True)         # EUP recip, free slot

    return kernel


def gcn_forward(x, params):
    lg = len(params["wcheb"])
    n = x.shape[0]
    num_classes = params["w2"].shape[-1]
    num_inputs = 1 + lg + 6
    return pl.pallas_call(
        _make_gcn_kernel(lg),
        out_shape=jax.ShapeDtypeStruct((n, num_classes), jnp.float32),
        in_specs=[_vmem()] * num_inputs,
        out_specs=_vmem(),
    )(x, *params["wcheb"], params["w1"], params["b1"],
      params["bn_scale"], params["bn_shift"], params["w2"], params["b2"])


# ---------------------------------------------------------------------------
# Parameter init (deterministic, synthetic) with host-side folding:
#   * Cheb weights prefolded per coefficient: [W0 - W2 ; W1 ; 2*W2] -> (3, Fin, hgc), bf16
#   * Classifier W1 blocked per GCN layer:    (lg*hgc, 256) -> (lg, hgc, 256), bf16
#   * BN eval stats folded: scale = gamma*rsqrt(var+eps), shift = beta - mean*scale
# ---------------------------------------------------------------------------
def init_params(key, input_dim, num_classes, hgc, lg):
    ks = jax.random.split(key, lg + 2)
    wcheb = []
    for i in range(lg):
        fin = input_dim if i == 0 else hgc
        scale = (2.0 / (fin + hgc)) ** 0.5                           # glorot-ish (ChebConv default)
        w = scale * jax.random.normal(ks[i], (3, fin, hgc), jnp.float32)
        wfold = jnp.stack([w[0] - w[2], w[1], 2.0 * w[2]], axis=0)   # (3, fin, hgc)
        wcheb.append(wfold.astype(jnp.bfloat16))

    cls_in = hgc * lg
    w1 = ((2.0 / cls_in) ** 0.5) * jax.random.normal(ks[lg], (cls_in, 256), jnp.float32)
    w1 = w1.reshape(lg, hgc, 256)                                    # split-K blocks
    w2 = ((2.0 / 256.0) ** 0.5) * jax.random.normal(ks[lg + 1], (256, num_classes), jnp.float32)

    gamma = jnp.ones((1, 256), jnp.float32)
    beta = jnp.zeros((1, 256), jnp.float32)
    mean = jnp.zeros((1, 256), jnp.float32)
    var = jnp.ones((1, 256), jnp.float32)
    bn_scale = gamma * jax.lax.rsqrt(var + BN_EPS)
    bn_shift = beta - mean * bn_scale

    return dict(
        wcheb=wcheb,
        w1=w1.astype(jnp.bfloat16), b1=jnp.zeros((1, 256), jnp.float32),
        bn_scale=bn_scale, bn_shift=bn_shift,
        w2=w2.astype(jnp.bfloat16), b2=jnp.zeros((1, num_classes), jnp.float32),
    )


if __name__ == "__main__":
    # small, module-consistent sizes: N=16 graph nodes, input_dim=32, hgc=32, lg=2, 4 classes
    N, INPUT_DIM, NUM_CLASSES, HGC, LG = 16, 32, 4, 32, 2

    key = jax.random.PRNGKey(0)
    k_feat, k_noise, k_param = jax.random.split(key, 3)

    # clustered features so the >0.9 cosine-similarity threshold yields some edges
    centers = jax.random.normal(k_feat, (4, INPUT_DIM), jnp.float32)
    assign = jnp.arange(N) % 4
    x = centers[assign] + 0.05 * jax.random.normal(k_noise, (N, INPUT_DIM), jnp.float32)

    params = init_params(k_param, INPUT_DIM, NUM_CLASSES, HGC, LG)

    out = gcn_forward(x, params)
    out = jax.block_until_ready(out)

    assert out.shape == (N, NUM_CLASSES)
    assert bool(jnp.all(jnp.isfinite(out)))
    print("KERNEL_OK")
</pallas_src>

<mosaic_0001>
module attributes {stable_mosaic.version = 11 : i64} {
  func.func @kernel(%arg0: memref<16x32xf32, #tpu.memory_space<vmem>>, %arg1: memref<3x32x32xbf16, #tpu.memory_space<vmem>>, %arg2: memref<3x32x32xbf16, #tpu.memory_space<vmem>>, %arg3: memref<2x32x256xbf16, #tpu.memory_space<vmem>>, %arg4: memref<1x256xf32, #tpu.memory_space<vmem>>, %arg5: memref<1x256xf32, #tpu.memory_space<vmem>>, %arg6: memref<1x256xf32, #tpu.memory_space<vmem>>, %arg7: memref<256x4xbf16, #tpu.memory_space<vmem>>, %arg8: memref<1x4xf32, #tpu.memory_space<vmem>>, %arg9: memref<16x4xf32, #tpu.memory_space<vmem>>) attributes {dimension_semantics = [], scalar_prefetch = 0 : i64, scratch_operands = 0 : i64, tpu.core_type = #tpu.core_type<tc>} {
    %c0 = arith.constant 0 : index
    %c0_0 = arith.constant 0 : index
    %0 = vector.load %arg0[%c0, %c0_0] : memref<16x32xf32, #tpu.memory_space<vmem>>, vector<16x32xf32>
    %1 = arith.mulf %0, %0 : vector<16x32xf32>
    %cst = arith.constant dense<0.000000e+00> : vector<16xf32>
    %2 = vector.multi_reduction <add>, %1, %cst [1] : vector<16x32xf32> to vector<16xf32>
    %3 = vector.shape_cast %2 : vector<16xf32> to vector<16x1xf32>
    %cst_1 = arith.constant 0.000000e+00 : f32
    %4 = vector.broadcast %cst_1 : f32 to vector<16x1xf32>
    %5 = arith.cmpf ogt, %3, %4 : vector<16x1xf32>
    %6 = math.rsqrt %3 : vector<16x1xf32>
    %cst_2 = arith.constant 0.000000e+00 : f32
    %7 = vector.broadcast %cst_2 : f32 to vector<16x1xf32>
    %8 = arith.select %5, %6, %7 : vector<16x1xi1>, vector<16x1xf32>
    %9 = vector.broadcast %8 : vector<16x1xf32> to vector<16x32xf32>
    %10 = arith.mulf %0, %9 : vector<16x32xf32>
    %11 = tpu.transpose %10, [1, 0] : vector<16x32xf32> -> vector<32x16xf32>
    %cst_3 = arith.constant dense<0.000000e+00> : vector<16x16xf32>
    %12 = tpu.matmul %10, %11, %cst_3 {dimension_numbers = #tpu.dot_dimension_numbers<[1], [0], [0], [1], [0, 0, 1, 1], [], []>} : vector<16x32xf32>, vector<32x16xf32>, vector<16x16xf32> -> vector<16x16xf32>
    %13 = tpu.iota {dimensions = array<i32: 0>} : vector<16x16xi32>
    %14 = tpu.iota {dimensions = array<i32: 1>} : vector<16x16xi32>
    %cst_4 = arith.constant 0.899999976 : f32
    %15 = vector.broadcast %cst_4 : f32 to vector<16x16xf32>
    %16 = arith.cmpf ogt, %12, %15 : vector<16x16xf32>
    %17 = arith.cmpi ne, %13, %14 : vector<16x16xi32>
    %18 = arith.andi %16, %17 : vector<16x16xi1>
    %cst_5 = arith.constant 0.000000e+00 : f32
    %19 = vector.broadcast %cst_5 : f32 to vector<16x16xf32>
    %20 = arith.select %18, %12, %19 : vector<16x16xi1>, vector<16x16xf32>
    %cst_6 = arith.constant dense<0.000000e+00> : vector<16xf32>
    %21 = vector.multi_reduction <add>, %20, %cst_6 [1] : vector<16x16xf32> to vector<16xf32>
    %22 = vector.shape_cast %21 : vector<16xf32> to vector<16x1xf32>
    %cst_7 = arith.constant dense<0.000000e+00> : vector<16xf32>
    %23 = vector.multi_reduction <add>, %20, %cst_7 [0] : vector<16x16xf32> to vector<16xf32>
    %24 = vector.shape_cast %23 : vector<16xf32> to vector<1x16xf32>
    %cst_8 = arith.constant 0.000000e+00 : f32
    %25 = vector.broadcast %cst_8 : f32 to vector<16x1xf32>
    %26 = arith.cmpf ogt, %22, %25 : vector<16x1xf32>
    %27 = math.rsqrt %22 : vector<16x1xf32>
    %cst_9 = arith.constant 0.000000e+00 : f32
    %28 = vector.broadcast %cst_9 : f32 to vector<16x1xf32>
    %29 = arith.select %26, %27, %28 : vector<16x1xi1>, vector<16x1xf32>
    %cst_10 = arith.constant 0.000000e+00 : f32
    %30 = vector.broadcast %cst_10 : f32 to vector<1x16xf32>
    %31 = arith.cmpf ogt, %24, %30 : vector<1x16xf32>
    %32 = math.rsqrt %24 : vector<1x16xf32>
    %cst_11 = arith.constant 0.000000e+00 : f32
    %33 = vector.broadcast %cst_11 : f32 to vector<1x16xf32>
    %34 = arith.select %31, %32, %33 : vector<1x16xi1>, vector<1x16xf32>
    %35 = vector.broadcast %29 : vector<16x1xf32> to vector<16x16xf32>
    %36 = arith.mulf %35, %20 : vector<16x16xf32>
    %37 = vector.broadcast %34 : vector<1x16xf32> to vector<16x16xf32>
    %38 = arith.mulf %36, %37 : vector<16x16xf32>
    %cst_12 = arith.constant 0.000000e+00 : f32
    %39 = vector.broadcast %cst_12 : f32 to vector<16x16xf32>
    %40 = arith.subf %39, %38 : vector<16x16xf32>
    %41 = arith.truncf %40 : vector<16x16xf32> to vector<16x16xbf16>
    %42 = arith.truncf %0 : vector<16x32xf32> to vector<16x32xbf16>
    %cst_13 = arith.constant dense<0.000000e+00> : vector<16x32xf32>
    %43 = tpu.matmul %41, %42, %cst_13 {dimension_numbers = #tpu.dot_dimension_numbers<[1], [0], [0], [1], [0, 0, 1, 1], [], []>} : vector<16x16xbf16>, vector<16x32xbf16>, vector<16x32xf32> -> vector<16x32xf32>
    %44 = arith.truncf %43 : vector<16x32xf32> to vector<16x32xbf16>
    %cst_14 = arith.constant dense<0.000000e+00> : vector<16x32xf32>
    %45 = tpu.matmul %41, %44, %cst_14 {dimension_numbers = #tpu.dot_dimension_numbers<[1], [0], [0], [1], [0, 0, 1, 1], [], []>} : vector<16x16xbf16>, vector<16x32xbf16>, vector<16x32xf32> -> vector<16x32xf32>
    %c0_15 = arith.constant 0 : index
    %c0_16 = arith.constant 0 : index
    %c0_17 = arith.constant 0 : index
    %46 = vector.load %arg1[%c0_15, %c0_16, %c0_17] : memref<3x32x32xbf16, #tpu.memory_space<vmem>>, vector<1x32x32xbf16>
    %47 = vector.shape_cast %46 : vector<1x32x32xbf16> to vector<32x32xbf16>
    %cst_18 = arith.constant dense<0.000000e+00> : vector<16x32xf32>
    %48 = tpu.matmul %42, %47, %cst_18 {dimension_numbers = #tpu.dot_dimension_numbers<[1], [0], [0], [1], [0, 0, 1, 1], [], []>} : vector<16x32xbf16>, vector<32x32xbf16>, vector<16x32xf32> -> vector<16x32xf32>
    %c1 = arith.constant 1 : index
    %c0_19 = arith.constant 0 : index
    %c0_20 = arith.constant 0 : index
    %49 = vector.load %arg1[%c1, %c0_19, %c0_20] : memref<3x32x32xbf16, #tpu.memory_space<vmem>>, vector<1x32x32xbf16>
    %50 = vector.shape_cast %49 : vector<1x32x32xbf16> to vector<32x32xbf16>
    %cst_21 = arith.constant dense<0.000000e+00> : vector<16x32xf32>
    %51 = tpu.matmul %44, %50, %cst_21 {dimension_numbers = #tpu.dot_dimension_numbers<[1], [0], [0], [1], [0, 0, 1, 1], [], []>} : vector<16x32xbf16>, vector<32x32xbf16>, vector<16x32xf32> -> vector<16x32xf32>
    %52 = arith.addf %48, %51 : vector<16x32xf32>
    %53 = arith.truncf %45 : vector<16x32xf32> to vector<16x32xbf16>
    %c2 = arith.constant 2 : index
    %c0_22 = arith.constant 0 : index
    %c0_23 = arith.constant 0 : index
    %54 = vector.load %arg1[%c2, %c0_22, %c0_23] : memref<3x32x32xbf16, #tpu.memory_space<vmem>>, vector<1x32x32xbf16>
    %55 = vector.shape_cast %54 : vector<1x32x32xbf16> to vector<32x32xbf16>
    %cst_24 = arith.constant dense<0.000000e+00> : vector<16x32xf32>
    %56 = tpu.matmul %53, %55, %cst_24 {dimension_numbers = #tpu.dot_dimension_numbers<[1], [0], [0], [1], [0, 0, 1, 1], [], []>} : vector<16x32xbf16>, vector<32x32xbf16>, vector<16x32xf32> -> vector<16x32xf32>
    %57 = arith.addf %52, %56 : vector<16x32xf32>
    %cst_25 = arith.constant 0.000000e+00 : f32
    %58 = vector.broadcast %cst_25 : f32 to vector<16x32xf32>
    %59 = arith.maximumf %57, %58 : vector<16x32xf32>
    %60 = arith.truncf %59 : vector<16x32xf32> to vector<16x32xbf16>
    %c0_26 = arith.constant 0 : index
    %c0_27 = arith.constant 0 : index
    %c0_28 = arith.constant 0 : index
    %61 = vector.load %arg3[%c0_26, %c0_27, %c0_28] : memref<2x32x256xbf16, #tpu.memory_space<vmem>>, vector<1x32x256xbf16>
    %62 = vector.shape_cast %61 : vector<1x32x256xbf16> to vector<32x256xbf16>
    %cst_29 = arith.constant dense<0.000000e+00> : vector<16x256xf32>
    %63 = tpu.matmul %60, %62, %cst_29 {dimension_numbers = #tpu.dot_dimension_numbers<[1], [0], [0], [1], [0, 0, 1, 1], [], []>} : vector<16x32xbf16>, vector<32x256xbf16>, vector<16x256xf32> -> vector<16x256xf32>
    %cst_30 = arith.constant dense<0.000000e+00> : vector<16x32xf32>
    %64 = tpu.matmul %41, %60, %cst_30 {dimension_numbers = #tpu.dot_dimension_numbers<[1], [0], [0], [1], [0, 0, 1, 1], [], []>} : vector<16x16xbf16>, vector<16x32xbf16>, vector<16x32xf32> -> vector<16x32xf32>
    %65 = arith.truncf %64 : vector<16x32xf32> to vector<16x32xbf16>
    %cst_31 = arith.constant dense<0.000000e+00> : vector<16x32xf32>
    %66 = tpu.matmul %41, %65, %cst_31 {dimension_numbers = #tpu.dot_dimension_numbers<[1], [0], [0], [1], [0, 0, 1, 1], [], []>} : vector<16x16xbf16>, vector<16x32xbf16>, vector<16x32xf32> -> vector<16x32xf32>
    %c0_32 = arith.constant 0 : index
    %c0_33 = arith.constant 0 : index
    %c0_34 = arith.constant 0 : index
    %67 = vector.load %arg2[%c0_32, %c0_33, %c0_34] : memref<3x32x32xbf16, #tpu.memory_space<vmem>>, vector<1x32x32xbf16>
    %68 = vector.shape_cast %67 : vector<1x32x32xbf16> to vector<32x32xbf16>
    %cst_35 = arith.constant dense<0.000000e+00> : vector<16x32xf32>
    %69 = tpu.matmul %60, %68, %cst_35 {dimension_numbers = #tpu.dot_dimension_numbers<[1], [0], [0], [1], [0, 0, 1, 1], [], []>} : vector<16x32xbf16>, vector<32x32xbf16>, vector<16x32xf32> -> vector<16x32xf32>
    %c1_36 = arith.constant 1 : index
    %c0_37 = arith.constant 0 : index
    %c0_38 = arith.constant 0 : index
    %70 = vector.load %arg2[%c1_36, %c0_37, %c0_38] : memref<3x32x32xbf16, #tpu.memory_space<vmem>>, vector<1x32x32xbf16>
    %71 = vector.shape_cast %70 : vector<1x32x32xbf16> to vector<32x32xbf16>
    %cst_39 = arith.constant dense<0.000000e+00> : vector<16x32xf32>
    %72 = tpu.matmul %65, %71, %cst_39 {dimension_numbers = #tpu.dot_dimension_numbers<[1], [0], [0], [1], [0, 0, 1, 1], [], []>} : vector<16x32xbf16>, vector<32x32xbf16>, vector<16x32xf32> -> vector<16x32xf32>
    %73 = arith.addf %69, %72 : vector<16x32xf32>
    %74 = arith.truncf %66 : vector<16x32xf32> to vector<16x32xbf16>
    %c2_40 = arith.constant 2 : index
    %c0_41 = arith.constant 0 : index
    %c0_42 = arith.constant 0 : index
    %75 = vector.load %arg2[%c2_40, %c0_41, %c0_42] : memref<3x32x32xbf16, #tpu.memory_space<vmem>>, vector<1x32x32xbf16>
    %76 = vector.shape_cast %75 : vector<1x32x32xbf16> to vector<32x32xbf16>
    %cst_43 = arith.constant dense<0.000000e+00> : vector<16x32xf32>
    %77 = tpu.matmul %74, %76, %cst_43 {dimension_numbers = #tpu.dot_dimension_numbers<[1], [0], [0], [1], [0, 0, 1, 1], [], []>} : vector<16x32xbf16>, vector<32x32xbf16>, vector<16x32xf32> -> vector<16x32xf32>
    %78 = arith.addf %73, %77 : vector<16x32xf32>
    %cst_44 = arith.constant 0.000000e+00 : f32
    %79 = vector.broadcast %cst_44 : f32 to vector<16x32xf32>
    %80 = arith.maximumf %78, %79 : vector<16x32xf32>
    %81 = arith.truncf %80 : vector<16x32xf32> to vector<16x32xbf16>
    %c1_45 = arith.constant 1 : index
    %c0_46 = arith.constant 0 : index
    %c0_47 = arith.constant 0 : index
    %82 = vector.load %arg3[%c1_45, %c0_46, %c0_47] : memref<2x32x256xbf16, #tpu.memory_space<vmem>>, vector<1x32x256xbf16>
    %83 = vector.shape_cast %82 : vector<1x32x256xbf16> to vector<32x256xbf16>
    %cst_48 = arith.constant dense<0.000000e+00> : vector<16x256xf32>
    %84 = tpu.matmul %81, %83, %cst_48 {dimension_numbers = #tpu.dot_dimension_numbers<[1], [0], [0], [1], [0, 0, 1, 1], [], []>} : vector<16x32xbf16>, vector<32x256xbf16>, vector<16x256xf32> -> vector<16x256xf32>
    %85 = arith.addf %63, %84 : vector<16x256xf32>
    %c0_49 = arith.constant 0 : index
    %c0_50 = arith.constant 0 : index
    %86 = vector.load %arg4[%c0_49, %c0_50] : memref<1x256xf32, #tpu.memory_space<vmem>>, vector<1x256xf32>
    %87 = vector.broadcast %86 : vector<1x256xf32> to vector<16x256xf32>
    %88 = arith.addf %85, %87 : vector<16x256xf32>
    %cst_51 = arith.constant 0.000000e+00 : f32
    %89 = vector.broadcast %cst_51 : f32 to vector<16x256xf32>
    %90 = arith.maximumf %88, %89 : vector<16x256xf32>
    %c0_52 = arith.constant 0 : index
    %c0_53 = arith.constant 0 : index
    %91 = vector.load %arg5[%c0_52, %c0_53] : memref<1x256xf32, #tpu.memory_space<vmem>>, vector<1x256xf32>
    %92 = vector.broadcast %91 : vector<1x256xf32> to vector<16x256xf32>
    %93 = arith.mulf %90, %92 : vector<16x256xf32>
    %c0_54 = arith.constant 0 : index
    %c0_55 = arith.constant 0 : index
    %94 = vector.load %arg6[%c0_54, %c0_55] : memref<1x256xf32, #tpu.memory_space<vmem>>, vector<1x256xf32>
    %95 = vector.broadcast %94 : vector<1x256xf32> to vector<16x256xf32>
    %96 = arith.addf %93, %95 : vector<16x256xf32>
    %97 = arith.truncf %96 : vector<16x256xf32> to vector<16x256xbf16>
    %c0_56 = arith.constant 0 : index
    %c0_57 = arith.constant 0 : index
    %98 = vector.load %arg7[%c0_56, %c0_57] : memref<256x4xbf16, #tpu.memory_space<vmem>>, vector<256x4xbf16>
    %cst_58 = arith.constant dense<0.000000e+00> : vector<16x4xf32>
    %99 = tpu.matmul %97, %98, %cst_58 {dimension_numbers = #tpu.dot_dimension_numbers<[1], [0], [0], [1], [0, 0, 1, 1], [], []>} : vector<16x256xbf16>, vector<256x4xbf16>, vector<16x4xf32> -> vector<16x4xf32>
    %c0_59 = arith.constant 0 : index
    %c0_60 = arith.constant 0 : index
    %100 = vector.load %arg8[%c0_59, %c0_60] : memref<1x4xf32, #tpu.memory_space<vmem>>, vector<1x4xf32>
    %101 = vector.broadcast %100 : vector<1x4xf32> to vector<16x4xf32>
    %102 = arith.addf %99, %101 : vector<16x4xf32>
    %cst_61 = arith.constant dense<0xFF800000> : vector<16xf32>
    %103 = vector.multi_reduction <maximumf>, %102, %cst_61 [1] : vector<16x4xf32> to vector<16xf32>
    %104 = vector.shape_cast %103 : vector<16xf32> to vector<16x1xf32>
    %105 = vector.broadcast %104 : vector<16x1xf32> to vector<16x4xf32>
    %106 = arith.subf %102, %105 : vector<16x4xf32>
    %107 = math.exp %106 : vector<16x4xf32>
    %cst_62 = arith.constant dense<0.000000e+00> : vector<16xf32>
    %108 = vector.multi_reduction <add>, %107, %cst_62 [1] : vector<16x4xf32> to vector<16xf32>
    %109 = vector.shape_cast %108 : vector<16xf32> to vector<16x1xf32>
    %110 = tpu.reciprocal %109 {approx = true} : vector<16x1xf32> -> vector<16x1xf32>
    %111 = vector.broadcast %110 : vector<16x1xf32> to vector<16x4xf32>
    %112 = arith.mulf %107, %111 : vector<16x4xf32>
    %c0_63 = arith.constant 0 : index
    %c0_64 = arith.constant 0 : index
    %113 = vector.load %arg9[%c0_63, %c0_64] : memref<16x4xf32, #tpu.memory_space<vmem>>, vector<16x4xf32>
    tpu.vector_store %arg9[%c0_63, %c0_64], %112 {strides = array<i32>} : memref<16x4xf32, #tpu.memory_space<vmem>>, vector<16x4xf32>,
    return
  }
}

</mosaic_0001>

<llo_original>
// kernel: tpu_custom_call.1
$region0: #{tpu_custom_call.1}
  #allocation0 [shape = 'u32[]', space=smem, size = 0x4, offset = 0x4, fixed_abs, tag = 'smem constant byte address 0x4 - core index']
  #allocation1 [shape = 'u32[144,128]{1,0:T(1,128)}', space=vmem, size = 0x12000, scoped, tag = 'internal scratch']
  %s0 = inlined_call_operand.vmem [shape: f32[16,32], index: 0, kind: input, shape index: {}]
  %s1 = inlined_call_operand.vmem [shape: bf16[3,32,32], index: 1, kind: input, shape index: {}]
  %s2 = inlined_call_operand.hbm [shape: bf16[3,32,32], index: 2, kind: input, shape index: {}]
  %s3 = inlined_call_operand.vmem [shape: bf16[2,32,256], index: 3, kind: input, shape index: {}]
  %s4 = inlined_call_operand.vmem [shape: f32[1,256], index: 4, kind: input, shape index: {}]
  %s5 = inlined_call_operand.vmem [shape: f32[1,256], index: 5, kind: input, shape index: {}]
  %s6 = inlined_call_operand.vmem [shape: f32[1,256], index: 6, kind: input, shape index: {}]
  %s7 = inlined_call_operand.vmem [shape: bf16[256,4], index: 7, kind: input, shape index: {}]
  %s8 = inlined_call_operand.vmem [shape: f32[1,4], index: 8, kind: input, shape index: {}]
  %s9 = inlined_call_operand.vmem [shape: f32[16,4], index: 9, kind: output, shape index: {}]
  %s10 = sld [smem:[#allocation0]]
  $region50: #{tpu_custom_call.1} parent=0
    _
  %s12 = ssub.s32 1, %s10
  %s13 = scalar_select 0, %s12, %s10
  $region1: #{tpu_custom_call.1} parent=0
    #allocation2 [shape = 'u8[24576]{0}', space=vmem, size = 0x6000, scoped, tag = 'input window, operand 2, single buffered']
    #allocation3 [shape = 's32[1]{0}', space=sflag, size = 0x4, scoped, tag = 'scoped memory for tpu_custom_call.1']
    %14 = vsyncpa [#allocation3], 0
    // Predicated region
    $region2: #{tpu_custom_call.1} parent=1 // pred_check
      _
    $region3: #{tpu_custom_call.1} parent=1 // pred_check_branch
      %16 = sbr.rel (0) target = $region5
    $region4: #{tpu_custom_call.1} parent=1 // pred_region
      _
    $region5: #{tpu_custom_call.1} parent=1 // pred_fallthru
      _
    // Predicated region
    $region6: #{tpu_custom_call.1} parent=1 // pred_check
      _
    $region7: #{tpu_custom_call.1} parent=1 // pred_check_branch
      %18 = sbr.rel (0) target = $region9
    $region8: #{tpu_custom_call.1} parent=1 // pred_region
      _
    $region9: #{tpu_custom_call.1} parent=1 // pred_fallthru
      _
    // Predicated region
    $region10: #{tpu_custom_call.1} parent=1 // pred_check
      _
    $region11: #{tpu_custom_call.1} parent=1 // pred_check_branch
      %20 = sbr.rel (0) target = $region13
    $region12: #{tpu_custom_call.1} parent=1 // pred_region
      %s22 = ssub.s32 768, 768
      %23 = vsyncadd [#allocation3], %s22
      %s24 = sshll.u32 [#allocation2], 4
      %s25 = int_to_ptr.vmem [resolvable:$true] %s24
      %30 = dma.hbm_to_vmem [thread:$0]  %s2, 768, %s25, [#allocation3], 64, 64, 4
    $region13: #{tpu_custom_call.1} parent=1 // pred_fallthru
      _
    // Predicated region
    $region14: #{tpu_custom_call.1} parent=1 // pred_check
      _
    $region15: #{tpu_custom_call.1} parent=1 // pred_check_branch
      %32 = sbr.rel (0) target = $region17
    $region16: #{tpu_custom_call.1} parent=1 // pred_region
      _
    $region17: #{tpu_custom_call.1} parent=1 // pred_fallthru
      _
    // Predicated region
    $region18: #{tpu_custom_call.1} parent=1 // pred_check
      _
    $region19: #{tpu_custom_call.1} parent=1 // pred_check_branch
      %34 = sbr.rel (0) target = $region21
    $region20: #{tpu_custom_call.1} parent=1 // pred_region
      _
    $region21: #{tpu_custom_call.1} parent=1 // pred_fallthru
      _
    // Predicated region
    $region22: #{tpu_custom_call.1} parent=1 // pred_check
      _
    $region23: #{tpu_custom_call.1} parent=1 // pred_check_branch
      %36 = sbr.rel (0) target = $region25
    $region24: #{tpu_custom_call.1} parent=1 // pred_region
      _
    $region25: #{tpu_custom_call.1} parent=1 // pred_fallthru
      _
    // Predicated region
    $region26: #{tpu_custom_call.1} parent=1 // pred_check
      _
    $region27: #{tpu_custom_call.1} parent=1 // pred_check_branch
      %38 = sbr.rel (0) target = $region29
    $region28: #{tpu_custom_call.1} parent=1 // pred_region
      _
    $region29: #{tpu_custom_call.1} parent=1 // pred_fallthru
      _
    // Predicated region
    $region30: #{tpu_custom_call.1} parent=1 // pred_check
      _
    $region31: #{tpu_custom_call.1} parent=1 // pred_check_branch
      %40 = sbr.rel (0) target = $region33
    $region32: #{tpu_custom_call.1} parent=1 // pred_region
      _
    $region33: #{tpu_custom_call.1} parent=1 // pred_fallthru
      _
    // Predicated region
    $region34: #{tpu_custom_call.1} parent=1 // pred_check
      _
    $region35: #{tpu_custom_call.1} parent=1 // pred_check_branch
      %42 = sbr.rel (0) target = $region37
    $region36: #{tpu_custom_call.1} parent=1 // pred_region
      _
    $region37: #{tpu_custom_call.1} parent=1 // pred_fallthru
      _
    // Predicated region
    $region38: #{tpu_custom_call.1} parent=1 // pred_check
      _
    $region39: #{tpu_custom_call.1} parent=1 // pred_check_branch
      %44 = sbr.rel (0) target = $region41
    $region40: #{tpu_custom_call.1} parent=1 // pred_region
      %45 = dma.done [#allocation3], 768
    $region41: #{tpu_custom_call.1} parent=1 // pred_fallthru
      _
    %v47 = vld [vmem:[%s0] sm:$0xff]
    %v48 = vld [vmem:[%s0 + $0x8] sm:$0xff]
    %v49 = vmul.f32 %v47, %v47
    %v50 = vmul.f32 %v48, %v48
    %vm51 = vcmask 261120
    %v52 = vsel %vm51, %v49, 0.0
    %53 = vadd.xlane.f32.xlu0 %v52
    %v54 = vpop.xlane.xlu0 %53
    %v55 = vsel %vm51, %v50, 0.0
    %56 = vadd.xlane.f32.xlu0 %v55
    %v57 = vpop.xlane.xlu0 %56
    %vm58 = vcmp.gt.f32.partialorder %v54, 0.0
    %vm59 = vcmp.gt.f32.partialorder %v57, 0.0
    %v60 = vrsqrt.pop %v54
    %v61 = vrsqrt.pop %v57
    %v62 = vsel %vm58, %v60, 0.0
    %v63 = vsel %vm59, %v61, 0.0
    %v64 = vmul.f32 %v47, %v62
    %v65 = vmul.f32 %v48, %v63
    %v67 = vsel %vm51, %v64, 0
    %v70 = vsel %vm51, %v65, 0
    %72 = vmatprep.subr.mxu0 0.0
    %73 = vmatpush1.xpose.msra.mxu0 %v67
    %74 = vmatprep.subr.mxu0 0.0
    %75 = vmatpush1.xpose.msra.mxu0 %v70
    %76 = vmatprep.subr.mxu0 0.0
    %77 = vmatpush1.xpose.msra.mxu0 0.0
    %78 = vmatprep.subr.mxu0 0.0
    %79 = vmatpush1.xpose.msra.mxu0 0.0
    %80 = vmatprep.subr.mxu0 0.0
    %81 = vmatpush1.xpose.msra.mxu0 0.0
    %82 = vmatprep.subr.mxu0 0.0
    %83 = vmatpush1.xpose.msra.mxu0 0.0
    %84 = vmatprep.subr.mxu0 0.0
    %85 = vmatpush1.xpose.msra.mxu0 0.0
    %86 = vmatprep.subr.mxu0 0.0
    %87 = vmatpush1.xpose.msra.mxu0 0.0
    %88 = vmatprep.subr.mxu0 0.0
    %89 = vmatpush1.xpose.msra.mxu0 0.0
    %90 = vmatprep.subr.mxu0 0.0
    %91 = vmatpush1.xpose.msra.mxu0 0.0
    %92 = vmatprep.subr.mxu0 0.0
    %93 = vmatpush1.xpose.msra.mxu0 0.0
    %94 = vmatprep.subr.mxu0 0.0
    %95 = vmatpush1.xpose.msra.mxu0 0.0
    %96 = vmatprep.subr.mxu0 0.0
    %97 = vmatpush1.xpose.msra.mxu0 0.0
    %98 = vmatprep.subr.mxu0 0.0
    %99 = vmatpush1.xpose.msra.mxu0 0.0
    %100 = vmatprep.subr.mxu0 0.0
    %101 = vmatpush1.xpose.msra.mxu0 0.0
    %102 = vmatprep.subr.mxu0 0.0
    %103 = vmatpush1.xpose.msra.mxu0 0.0
    %104 = vmatprep.subr.mxu0 0.0
    %105 = vmatpush1.xpose.msra.mxu0 0.0
    %106 = vmatprep.subr.mxu0 0.0
    %107 = vmatpush1.xpose.msra.mxu0 0.0
    %108 = vmatprep.subr.mxu0 0.0
    %109 = vmatpush1.xpose.msra.mxu0 0.0
    %110 = vmatprep.subr.mxu0 0.0
    %111 = vmatpush1.xpose.msra.mxu0 0.0
    %112 = vmatprep.subr.mxu0 0.0
    %113 = vmatpush1.xpose.msra.mxu0 0.0
    %114 = vmatprep.subr.mxu0 0.0
    %115 = vmatpush1.xpose.msra.mxu0 0.0
    %116 = vmatprep.subr.mxu0 0.0
    %117 = vmatpush1.xpose.msra.mxu0 0.0
    %118 = vmatprep.subr.mxu0 0.0
    %119 = vmatpush1.xpose.msra.mxu0 0.0
    %120 = vmatprep.subr.mxu0 0.0
    %121 = vmatpush1.xpose.msra.mxu0 0.0
    %122 = vmatprep.subr.mxu0 0.0
    %123 = vmatpush1.xpose.msra.mxu0 0.0
    %124 = vmatprep.subr.mxu0 0.0
    %125 = vmatpush1.xpose.msra.mxu0 0.0
    %126 = vmatprep.subr.mxu0 0.0
    %127 = vmatpush1.xpose.msra.mxu0 0.0
    %128 = vmatprep.subr.mxu0 0.0
    %129 = vmatpush1.xpose.msra.mxu0 0.0
    %130 = vmatprep.subr.mxu0 0.0
    %131 = vmatpush1.xpose.msra.mxu0 0.0
    %132 = vmatprep.subr.mxu0 0.0
    %133 = vmatpush1.xpose.msra.mxu0 0.0
    %134 = vmatprep.subr.mxu0 0.0
    %135 = vmatpush1.xpose.msra.mxu0 0.0
    %136 = vmatprep.mubr.f32.mxu0 0.0
    %137 = vmatmul.mubr.f32.gmra.mrb[0].mxu0 %v67
    %v138 = vpop.f32.mrb[0].mxu0
    %v139 = vadd.f32 0.0, %v138
    %v140 = vpop.f32.mrb[0].mxu0
    %141 = vmatprep.mubr.f32.mxu0 0.0
    %142 = vmatmul.mubr.f32.gmra.mrb[0].mxu0 %v70
    %v143 = vpop.f32.mrb[0].mxu0
    %v144 = vadd.f32 0.0, %v143
    %v145 = vpop.f32.mrb[0].mxu0
    %146 = vdwg.mxu0
    %v147 = vlaneseq
    %v148 = vshrl.u32 %v147, 7
    %v149 = vadd.s32 %v148, 8
    %v150 = vlaneseq
    %v151 = vand.u32 %v150, 127
    %vm152 = vcmp.gt.f32.partialorder %v139, 0.9
    %vm153 = vcmp.gt.f32.partialorder %v144, 0.9
    %vm154 = vcmp.ne.s32.totalorder %v148, %v151
    %vm155 = vcmp.ne.s32.totalorder %v149, %v151
    %vm156 = vmand %vm152, %vm154
    %vm157 = vmand %vm153, %vm155
    %v158 = vsel %vm156, %v139, 0.0
    %v159 = vsel %vm157, %v144, 0.0
    %vm160 = vcmask 130048
    %v161 = vsel %vm160, %v158, 0.0
    %162 = vadd.xlane.f32.xlu0 %v161
    %v163 = vpop.xlane.xlu0 %162
    %v164 = vsel %vm160, %v159, 0.0
    %165 = vadd.xlane.f32.xlu0 %v164
    %v166 = vpop.xlane.xlu0 %165
    %v167 = vadd.f32 %v161, %v164
    %v168 = vrot.slane %v167, 4
    %v169 = vadd.f32 %v167, %v168
    %v170 = vrot.slane %v169, 2
    %v171 = vadd.f32 %v169, %v170
    %v172 = vrot.slane %v171, 1
    %v173 = vadd.f32 %v171, %v172
    %vm174 = vcmp.gt.f32.partialorder %v163, 0.0
    %vm175 = vcmp.gt.f32.partialorder %v166, 0.0
    %v176 = vrsqrt.pop %v163
    %v177 = vrsqrt.pop %v166
    %v178 = vsel %vm174, %v176, 0.0
    %v179 = vsel %vm175, %v177, 0.0
    %vm180 = vcmp.gt.f32.partialorder %v173, 0.0
    %v181 = vrsqrt.pop %v173
    %v182 = vsel %vm180, %v181, 0.0
    %v183 = vmul.f32 %v178, %v158
    %v184 = vmul.f32 %v179, %v159
    %v185 = vmul.f32 %v183, %v182
    %v186 = vmul.f32 %v184, %v182
    %v187 = vsub.f32 0.0, %v185
    %v188 = vsub.f32 0.0, %v186
    %v189 = vpack.c.bf16 %v188, %v187
    %v190 = vpack.c.bf16 %v48, %v47
    %v192 = vsel %vm160, %v189, 0
    %194 = vmatprep.subr.bf16.mxu0 0
    %195 = vmatpush1.bf16.msra.mxu0 %v190
    %196 = vmatprep.subr.bf16.mxu0 0
    %197 = vmatpush1.bf16.msra.mxu0 0
    %198 = vmatprep.subr.bf16.mxu0 0
    %199 = vmatpush1.bf16.msra.mxu0 0
    %200 = vmatprep.subr.bf16.mxu0 0
    %201 = vmatpush1.bf16.msra.mxu0 0
    %202 = vmatprep.subr.bf16.mxu0 0
    %203 = vmatpush1.bf16.msra.mxu0 0
    %204 = vmatprep.subr.bf16.mxu0 0
    %205 = vmatpush1.bf16.msra.mxu0 0
    %206 = vmatprep.subr.bf16.mxu0 0
    %207 = vmatpush1.bf16.msra.mxu0 0
    %208 = vmatprep.subr.bf16.mxu0 0
    %209 = vmatpush1.bf16.msra.mxu0 0
    %210 = vmatprep.subr.bf16.mxu0 0
    %211 = vmatpush1.bf16.msra.mxu0 0
    %212 = vmatprep.subr.bf16.mxu0 0
    %213 = vmatpush1.bf16.msra.mxu0 0
    %214 = vmatprep.subr.bf16.mxu0 0
    %215 = vmatpush1.bf16.msra.mxu0 0
    %216 = vmatprep.subr.bf16.mxu0 0
    %217 = vmatpush1.bf16.msra.mxu0 0
    %218 = vmatprep.subr.bf16.mxu0 0
    %219 = vmatpush1.bf16.msra.mxu0 0
    %220 = vmatprep.subr.bf16.mxu0 0
    %221 = vmatpush1.bf16.msra.mxu0 0
    %222 = vmatprep.subr.bf16.mxu0 0
    %223 = vmatpush1.bf16.msra.mxu0 0
    %224 = vmatprep.subr.bf16.mxu0 0
    %225 = vmatpush1.bf16.msra.mxu0 0
    %226 = vmatprep.mubr.bf16.mxu0 0
    %227 = vmatmul.mubr.bf16.gmra.mrb[0].mxu0 %v192
    %v228 = vpop.f32.mrb[0].mxu0
    %v229 = vadd.f32 0.0, %v228
    %v230 = vpop.f32.mrb[0].mxu0
    %v231 = vpop.f32.mrb[0].mxu0
    %v232 = vadd.f32 0.0, %v231
    %v233 = vpop.f32.mrb[0].mxu0
    %234 = vdwg.mxu0
    %v235 = vpack.c.bf16 %v232, %v229
    %236 = vmatprep.subr.bf16.mxu0 0
    %237 = vmatpush1.bf16.msra.mxu0 %v235
    %238 = vmatprep.subr.bf16.mxu0 0
    %239 = vmatpush1.bf16.msra.mxu0 0
    %240 = vmatprep.subr.bf16.mxu0 0
    %241 = vmatpush1.bf16.msra.mxu0 0
    %242 = vmatprep.subr.bf16.mxu0 0
    %243 = vmatpush1.bf16.msra.mxu0 0
    %244 = vmatprep.subr.bf16.mxu0 0
    %245 = vmatpush1.bf16.msra.mxu0 0
    %246 = vmatprep.subr.bf16.mxu0 0
    %247 = vmatpush1.bf16.msra.mxu0 0
    %248 = vmatprep.subr.bf16.mxu0 0
    %249 = vmatpush1.bf16.msra.mxu0 0
    %250 = vmatprep.subr.bf16.mxu0 0
    %251 = vmatpush1.bf16.msra.mxu0 0
    %252 = vmatprep.subr.bf16.mxu0 0
    %253 = vmatpush1.bf16.msra.mxu0 0
    %254 = vmatprep.subr.bf16.mxu0 0
    %255 = vmatpush1.bf16.msra.mxu0 0
    %256 = vmatprep.subr.bf16.mxu0 0
    %257 = vmatpush1.bf16.msra.mxu0 0
    %258 = vmatprep.subr.bf16.mxu0 0
    %259 = vmatpush1.bf16.msra.mxu0 0
    %260 = vmatprep.subr.bf16.mxu0 0
    %261 = vmatpush1.bf16.msra.mxu0 0
    %262 = vmatprep.subr.bf16.mxu0 0
    %263 = vmatpush1.bf16.msra.mxu0 0
    %264 = vmatprep.subr.bf16.mxu0 0
    %265 = vmatpush1.bf16.msra.mxu0 0
    %266 = vmatprep.subr.bf16.mxu0 0
    %267 = vmatpush1.bf16.msra.mxu0 0
    %268 = vmatprep.mubr.bf16.mxu0 0
    %269 = vmatmul.mubr.bf16.gmra.mrb[0].mxu0 %v192
    %v270 = vpop.f32.mrb[0].mxu0
    %v271 = vadd.f32 0.0, %v270
    %v272 = vpop.f32.mrb[0].mxu0
    %v273 = vpop.f32.mrb[0].mxu0
    %v274 = vadd.f32 0.0, %v273
    %v275 = vpop.f32.mrb[0].mxu0
    %276 = vdwg.mxu0
    %v277 = vld [vmem:[%s1] sm:$0xf]
    %v278 = vld [vmem:[%s1 + $0x4] sm:$0xf]
    %v279 = vld [vmem:[%s1 + $0x8] sm:$0xf]
    %v280 = vld [vmem:[%s1 + $0xc] sm:$0xf]
    %s281 = scalar_lea.vmem %s1, 16
    %v282 = vld [vmem:[%s281] sm:$0xf]
    %v283 = vld [vmem:[%s281 + $0x4] sm:$0xf]
    %v284 = vld [vmem:[%s281 + $0x8] sm:$0xf]
    %v285 = vld [vmem:[%s281 + $0xc] sm:$0xf]
    %v290 = vunpack.c.l.b16 %v282
    %v291 = vunpack.c.l.b16 %v283
    %v292 = vunpack.c.l.b16 %v284
    %v293 = vunpack.c.l.b16 %v285
    %v294 = vpack.c.b16 %v291, %v290
    %v295 = vpack.c.b16 %v293, %v292
    %v299 = vsel %vm51, %v235, 0
    %301 = vmatprep.subr.bf16.mxu0 0
    %302 = vmatpush1.bf16.msra.mxu0 %v294
    %303 = vmatprep.subr.bf16.mxu0 0
    %304 = vmatpush1.bf16.msra.mxu0 %v295
    %305 = vmatprep.subr.bf16.mxu0 0
    %306 = vmatpush1.bf16.msra.mxu0 0
    %307 = vmatprep.subr.bf16.mxu0 0
    %308 = vmatpush1.bf16.msra.mxu0 0
    %309 = vmatprep.subr.bf16.mxu0 0
    %310 = vmatpush1.bf16.msra.mxu0 0
    %311 = vmatprep.subr.bf16.mxu0 0
    %312 = vmatpush1.bf16.msra.mxu0 0
    %313 = vmatprep.subr.bf16.mxu0 0
    %314 = vmatpush1.bf16.msra.mxu0 0
    %315 = vmatprep.subr.bf16.mxu0 0
    %316 = vmatpush1.bf16.msra.mxu0 0
    %317 = vmatprep.subr.bf16.mxu0 0
    %318 = vmatpush1.bf16.msra.mxu0 0
    %319 = vmatprep.subr.bf16.mxu0 0
    %320 = vmatpush1.bf16.msra.mxu0 0
    %321 = vmatprep.subr.bf16.mxu0 0
    %322 = vmatpush1.bf16.msra.mxu0 0
    %323 = vmatprep.subr.bf16.mxu0 0
    %324 = vmatpush1.bf16.msra.mxu0 0
    %325 = vmatprep.subr.bf16.mxu0 0
    %326 = vmatpush1.bf16.msra.mxu0 0
    %327 = vmatprep.subr.bf16.mxu0 0
    %328 = vmatpush1.bf16.msra.mxu0 0
    %329 = vmatprep.subr.bf16.mxu0 0
    %330 = vmatpush1.bf16.msra.mxu0 0
    %331 = vmatprep.subr.bf16.mxu0 0
    %332 = vmatpush1.bf16.msra.mxu0 0
    %333 = vmatprep.mubr.bf16.mxu0 0
    %334 = vmatmul.mubr.bf16.gmra.mrb[0].mxu0 %v299
    %v335 = vpop.f32.mrb[0].mxu0
    %v336 = vadd.f32 0.0, %v335
    %v337 = vpop.f32.mrb[0].mxu0
    %v338 = vpop.f32.mrb[0].mxu0
    %v339 = vadd.f32 0.0, %v338
    %v340 = vpop.f32.mrb[0].mxu0
    %341 = vdwg.mxu0
    %v346 = vunpack.c.l.b16 %v277
    %v347 = vunpack.c.l.b16 %v278
    %v348 = vunpack.c.l.b16 %v279
    %v349 = vunpack.c.l.b16 %v280
    %v350 = vpack.c.b16 %v347, %v346
    %v351 = vpack.c.b16 %v349, %v348
    %v355 = vsel %vm51, %v190, 0
    %357 = vmatprep.subr.bf16.mxu0 0
    %358 = vmatpush1.bf16.msra.mxu0 %v350
    %359 = vmatprep.subr.bf16.mxu0 0
    %360 = vmatpush1.bf16.msra.mxu0 %v351
    %361 = vmatprep.subr.bf16.mxu0 0
    %362 = vmatpush1.bf16.msra.mxu0 0
    %363 = vmatprep.subr.bf16.mxu0 0
    %364 = vmatpush1.bf16.msra.mxu0 0
    %365 = vmatprep.subr.bf16.mxu0 0
    %366 = vmatpush1.bf16.msra.mxu0 0
    %367 = vmatprep.subr.bf16.mxu0 0
    %368 = vmatpush1.bf16.msra.mxu0 0
    %369 = vmatprep.subr.bf16.mxu0 0
    %370 = vmatpush1.bf16.msra.mxu0 0
    %371 = vmatprep.subr.bf16.mxu0 0
    %372 = vmatpush1.bf16.msra.mxu0 0
    %373 = vmatprep.subr.bf16.mxu0 0
    %374 = vmatpush1.bf16.msra.mxu0 0
    %375 = vmatprep.subr.bf16.mxu0 0
    %376 = vmatpush1.bf16.msra.mxu0 0
    %377 = vmatprep.subr.bf16.mxu0 0
    %378 = vmatpush1.bf16.msra.mxu0 0
    %379 = vmatprep.subr.bf16.mxu0 0
    %380 = vmatpush1.bf16.msra.mxu0 0
    %381 = vmatprep.subr.bf16.mxu0 0
    %382 = vmatpush1.bf16.msra.mxu0 0
    %383 = vmatprep.subr.bf16.mxu0 0
    %384 = vmatpush1.bf16.msra.mxu0 0
    %385 = vmatprep.subr.bf16.mxu0 0
    %386 = vmatpush1.bf16.msra.mxu0 0
    %387 = vmatprep.subr.bf16.mxu0 0
    %388 = vmatpush1.bf16.msra.mxu0 0
    %389 = vmatprep.mubr.bf16.mxu0 0
    %390 = vmatmul.mubr.bf16.gmra.mrb[0].mxu0 %v355
    %v391 = vpop.f32.mrb[0].mxu0
    %v392 = vadd.f32 %v336, %v391
    %v393 = vpop.f32.mrb[0].mxu0
    %v394 = vpop.f32.mrb[0].mxu0
    %v395 = vadd.f32 %v339, %v394
    %v396 = vpop.f32.mrb[0].mxu0
    %397 = vdwg.mxu0
    %v398 = vpack.c.bf16 %v274, %v271
    %s399 = scalar_lea.vmem %s1, 32
    %v400 = vld [vmem:[%s399] sm:$0xf]
    %v401 = vld [vmem:[%s399 + $0x4] sm:$0xf]
    %v402 = vld [vmem:[%s399 + $0x8] sm:$0xf]
    %v403 = vld [vmem:[%s399 + $0xc] sm:$0xf]
    %v408 = vunpack.c.l.b16 %v400
    %v409 = vunpack.c.l.b16 %v401
    %v410 = vunpack.c.l.b16 %v402
    %v411 = vunpack.c.l.b16 %v403
    %v412 = vpack.c.b16 %v409, %v408
    %v413 = vpack.c.b16 %v411, %v410
    %v417 = vsel %vm51, %v398, 0
    %419 = vmatprep.subr.bf16.mxu0 0
    %420 = vmatpush1.bf16.msra.mxu0 %v412
    %421 = vmatprep.subr.bf16.mxu0 0
    %422 = vmatpush1.bf16.msra.mxu0 %v413
    %423 = vmatprep.subr.bf16.mxu0 0
    %424 = vmatpush1.bf16.msra.mxu0 0
    %425 = vmatprep.subr.bf16.mxu0 0
    %426 = vmatpush1.bf16.msra.mxu0 0
    %427 = vmatprep.subr.bf16.mxu0 0
    %428 = vmatpush1.bf16.msra.mxu0 0
    %429 = vmatprep.subr.bf16.mxu0 0
    %430 = vmatpush1.bf16.msra.mxu0 0
    %431 = vmatprep.subr.bf16.mxu0 0
    %432 = vmatpush1.bf16.msra.mxu0 0
    %433 = vmatprep.subr.bf16.mxu0 0
    %434 = vmatpush1.bf16.msra.mxu0 0
    %435 = vmatprep.subr.bf16.mxu0 0
    %436 = vmatpush1.bf16.msra.mxu0 0
    %437 = vmatprep.subr.bf16.mxu0 0
    %438 = vmatpush1.bf16.msra.mxu0 0
    %439 = vmatprep.subr.bf16.mxu0 0
    %440 = vmatpush1.bf16.msra.mxu0 0
    %441 = vmatprep.subr.bf16.mxu0 0
    %442 = vmatpush1.bf16.msra.mxu0 0
    %443 = vmatprep.subr.bf16.mxu0 0
    %444 = vmatpush1.bf16.msra.mxu0 0
    %445 = vmatprep.subr.bf16.mxu0 0
    %446 = vmatpush1.bf16.msra.mxu0 0
    %447 = vmatprep.subr.bf16.mxu0 0
    %448 = vmatpush1.bf16.msra.mxu0 0
    %449 = vmatprep.subr.bf16.mxu0 0
    %450 = vmatpush1.bf16.msra.mxu0 0
    %451 = vmatprep.mubr.bf16.mxu0 0
    %452 = vmatmul.mubr.bf16.gmra.mrb[0].mxu0 %v417
    %v453 = vpop.f32.mrb[0].mxu0
    %v454 = vadd.f32 0.0, %v453
    %v455 = vpop.f32.mrb[0].mxu0
    %v456 = vpop.f32.mrb[0].mxu0
    %v457 = vadd.f32 0.0, %v456
    %v458 = vpop.f32.mrb[0].mxu0
    %459 = vdwg.mxu0
    %v460 = vadd.f32 %v392, %v454
    %v461 = vadd.f32 %v395, %v457
    %v462 = vmax.f32 %v460, 0.0
    %v463 = vmax.f32 %v461, 0.0
    %v464 = vpack.c.bf16 %v463, %v462
    %v465 = vld [vmem:[%s3] sm:$0xff]
    %v466 = vld [vmem:[%s3 + $0x8] sm:$0xff]
    %v467 = vld [vmem:[%s3 + $0x10] sm:$0xff]
    %v468 = vld [vmem:[%s3 + $0x18] sm:$0xff]
    %469 = vmatprep.subr.bf16.mxu0 0
    %470 = vmatpush1.bf16.msra.mxu0 %v464
    %471 = vmatprep.subr.bf16.mxu0 0
    %472 = vmatpush1.bf16.msra.mxu0 0
    %473 = vmatprep.subr.bf16.mxu0 0
    %474 = vmatpush1.bf16.msra.mxu0 0
    %475 = vmatprep.subr.bf16.mxu0 0
    %476 = vmatpush1.bf16.msra.mxu0 0
    %477 = vmatprep.subr.bf16.mxu0 0
    %478 = vmatpush1.bf16.msra.mxu0 0
    %479 = vmatprep.subr.bf16.mxu0 0
    %480 = vmatpush1.bf16.msra.mxu0 0
    %481 = vmatprep.subr.bf16.mxu0 0
    %482 = vmatpush1.bf16.msra.mxu0 0
    %483 = vmatprep.subr.bf16.mxu0 0
    %484 = vmatpush1.bf16.msra.mxu0 0
    %485 = vmatprep.subr.bf16.mxu0 0
    %486 = vmatpush1.bf16.msra.mxu0 0
    %487 = vmatprep.subr.bf16.mxu0 0
    %488 = vmatpush1.bf16.msra.mxu0 0
    %489 = vmatprep.subr.bf16.mxu0 0
    %490 = vmatpush1.bf16.msra.mxu0 0
    %491 = vmatprep.subr.bf16.mxu0 0
    %492 = vmatpush1.bf16.msra.mxu0 0
    %493 = vmatprep.subr.bf16.mxu0 0
    %494 = vmatpush1.bf16.msra.mxu0 0
    %495 = vmatprep.subr.bf16.mxu0 0
    %496 = vmatpush1.bf16.msra.mxu0 0
    %497 = vmatprep.subr.bf16.mxu0 0
    %498 = vmatpush1.bf16.msra.mxu0 0
    %499 = vmatprep.subr.bf16.mxu0 0
    %500 = vmatpush1.bf16.msra.mxu0 0
    %501 = vmatprep.mubr.bf16.mxu0 0
    %502 = vmatmul.mubr.bf16.gmra.mrb[0].mxu0 %v192
    %v503 = vpop.f32.mrb[0].mxu0
    %v504 = vadd.f32 0.0, %v503
    %v505 = vpop.f32.mrb[0].mxu0
    %v506 = vpop.f32.mrb[0].mxu0
    %v507 = vadd.f32 0.0, %v506
    %v508 = vpop.f32.mrb[0].mxu0
    %509 = vdwg.mxu0
    %v510 = vpack.c.bf16 %v507, %v504
    %511 = vmatprep.subr.bf16.mxu0 0
    %512 = vmatpush1.bf16.msra.mxu0 %v510
    %513 = vmatprep.subr.bf16.mxu0 0
    %514 = vmatpush1.bf16.msra.mxu0 0
    %515 = vmatprep.subr.bf16.mxu0 0
    %516 = vmatpush1.bf16.msra.mxu0 0
    %517 = vmatprep.subr.bf16.mxu0 0
    %518 = vmatpush1.bf16.msra.mxu0 0
    %519 = vmatprep.subr.bf16.mxu0 0
    %520 = vmatpush1.bf16.msra.mxu0 0
    %521 = vmatprep.subr.bf16.mxu0 0
    %522 = vmatpush1.bf16.msra.mxu0 0
    %523 = vmatprep.subr.bf16.mxu0 0
    %524 = vmatpush1.bf16.msra.mxu0 0
    %525 = vmatprep.subr.bf16.mxu0 0
    %526 = vmatpush1.bf16.msra.mxu0 0
    %527 = vmatprep.subr.bf16.mxu0 0
    %528 = vmatpush1.bf16.msra.mxu0 0
    %529 = vmatprep.subr.bf16.mxu0 0
    %530 = vmatpush1.bf16.msra.mxu0 0
    %531 = vmatprep.subr.bf16.mxu0 0
    %532 = vmatpush1.bf16.msra.mxu0 0
    %533 = vmatprep.subr.bf16.mxu0 0
    %534 = vmatpush1.bf16.msra.mxu0 0
    %535 = vmatprep.subr.bf16.mxu0 0
    %536 = vmatpush1.bf16.msra.mxu0 0
    %537 = vmatprep.subr.bf16.mxu0 0
    %538 = vmatpush1.bf16.msra.mxu0 0
    %539 = vmatprep.subr.bf16.mxu0 0
    %540 = vmatpush1.bf16.msra.mxu0 0
    %541 = vmatprep.subr.bf16.mxu0 0
    %542 = vmatpush1.bf16.msra.mxu0 0
    %543 = vmatprep.mubr.bf16.mxu0 0
    %544 = vmatmul.mubr.bf16.gmra.mrb[0].mxu0 %v192
    %v545 = vpop.f32.mrb[0].mxu0
    %v546 = vadd.f32 0.0, %v545
    %v547 = vpop.f32.mrb[0].mxu0
    %v548 = vpop.f32.mrb[0].mxu0
    %v549 = vadd.f32 0.0, %v548
    %v550 = vpop.f32.mrb[0].mxu0
    %551 = vdwg.mxu0
    %v552 = vld [vmem:[#allocation2] sm:$0xf]
    %v553 = vld [vmem:[#allocation2 + $0x4] sm:$0xf]
    %v554 = vld [vmem:[#allocation2 + $0x8] sm:$0xf]
    %v555 = vld [vmem:[#allocation2 + $0xc] sm:$0xf]
    %s556 = scalar_lea.vmem [#allocation2], 16
    %v557 = vld [vmem:[%s556] sm:$0xf]
    %v558 = vld [vmem:[%s556 + $0x4] sm:$0xf]
    %v559 = vld [vmem:[%s556 + $0x8] sm:$0xf]
    %v560 = vld [vmem:[%s556 + $0xc] sm:$0xf]
    %v565 = vunpack.c.l.b16 %v557
    %v566 = vunpack.c.l.b16 %v558
    %v567 = vunpack.c.l.b16 %v559
    %v568 = vunpack.c.l.b16 %v560
    %v569 = vpack.c.b16 %v566, %v565
    %v570 = vpack.c.b16 %v568, %v567
    %v574 = vsel %vm51, %v510, 0
    %576 = vmatprep.subr.bf16.mxu0 0
    %577 = vmatpush1.bf16.msra.mxu0 %v569
    %578 = vmatprep.subr.bf16.mxu0 0
    %579 = vmatpush1.bf16.msra.mxu0 %v570
    %580 = vmatprep.subr.bf16.mxu0 0
    %581 = vmatpush1.bf16.msra.mxu0 0
    %582 = vmatprep.subr.bf16.mxu0 0
    %583 = vmatpush1.bf16.msra.mxu0 0
    %584 = vmatprep.subr.bf16.mxu0 0
    %585 = vmatpush1.bf16.msra.mxu0 0
    %586 = vmatprep.subr.bf16.mxu0 0
    %587 = vmatpush1.bf16.msra.mxu0 0
    %588 = vmatprep.subr.bf16.mxu0 0
    %589 = vmatpush1.bf16.msra.mxu0 0
    %590 = vmatprep.subr.bf16.mxu0 0
    %591 = vmatpush1.bf16.msra.mxu0 0
    %592 = vmatprep.subr.bf16.mxu0 0
    %593 = vmatpush1.bf16.msra.mxu0 0
    %594 = vmatprep.subr.bf16.mxu0 0
    %595 = vmatpush1.bf16.msra.mxu0 0
    %596 = vmatprep.subr.bf16.mxu0 0
    %597 = vmatpush1.bf16.msra.mxu0 0
    %598 = vmatprep.subr.bf16.mxu0 0
    %599 = vmatpush1.bf16.msra.mxu0 0
    %600 = vmatprep.subr.bf16.mxu0 0
    %601 = vmatpush1.bf16.msra.mxu0 0
    %602 = vmatprep.subr.bf16.mxu0 0
    %603 = vmatpush1.bf16.msra.mxu0 0
    %604 = vmatprep.subr.bf16.mxu0 0
    %605 = vmatpush1.bf16.msra.mxu0 0
    %606 = vmatprep.subr.bf16.mxu0 0
    %607 = vmatpush1.bf16.msra.mxu0 0
    %608 = vmatprep.mubr.bf16.mxu0 0
    %609 = vmatmul.mubr.bf16.gmra.mrb[0].mxu0 %v574
    %v610 = vpop.f32.mrb[0].mxu0
    %v611 = vadd.f32 0.0, %v610
    %v612 = vpop.f32.mrb[0].mxu0
    %v613 = vpop.f32.mrb[0].mxu0
    %v614 = vadd.f32 0.0, %v613
    %v615 = vpop.f32.mrb[0].mxu0
    %616 = vdwg.mxu0
    %v621 = vunpack.c.l.b16 %v552
    %v622 = vunpack.c.l.b16 %v553
    %v623 = vunpack.c.l.b16 %v554
    %v624 = vunpack.c.l.b16 %v555
    %v625 = vpack.c.b16 %v622, %v621
    %v626 = vpack.c.b16 %v624, %v623
    %v630 = vsel %vm51, %v464, 0
    %632 = vmatprep.subr.bf16.mxu0 0
    %633 = vmatpush1.bf16.msra.mxu0 %v625
    %634 = vmatprep.subr.bf16.mxu0 0
    %635 = vmatpush1.bf16.msra.mxu0 %v626
    %636 = vmatprep.subr.bf16.mxu0 0
    %637 = vmatpush1.bf16.msra.mxu0 0
    %638 = vmatprep.subr.bf16.mxu0 0
    %639 = vmatpush1.bf16.msra.mxu0 0
    %640 = vmatprep.subr.bf16.mxu0 0
    %641 = vmatpush1.bf16.msra.mxu0 0
    %642 = vmatprep.subr.bf16.mxu0 0
    %643 = vmatpush1.bf16.msra.mxu0 0
    %644 = vmatprep.subr.bf16.mxu0 0
    %645 = vmatpush1.bf16.msra.mxu0 0
    %646 = vmatprep.subr.bf16.mxu0 0
    %647 = vmatpush1.bf16.msra.mxu0 0
    %648 = vmatprep.subr.bf16.mxu0 0
    %649 = vmatpush1.bf16.msra.mxu0 0
    %650 = vmatprep.subr.bf16.mxu0 0
    %651 = vmatpush1.bf16.msra.mxu0 0
    %652 = vmatprep.subr.bf16.mxu0 0
    %653 = vmatpush1.bf16.msra.mxu0 0
    %654 = vmatprep.subr.bf16.mxu0 0
    %655 = vmatpush1.bf16.msra.mxu0 0
    %656 = vmatprep.subr.bf16.mxu0 0
    %657 = vmatpush1.bf16.msra.mxu0 0
    %658 = vmatprep.subr.bf16.mxu0 0
    %659 = vmatpush1.bf16.msra.mxu0 0
    %660 = vmatprep.subr.bf16.mxu0 0
    %661 = vmatpush1.bf16.msra.mxu0 0
    %662 = vmatprep.subr.bf16.mxu0 0
    %663 = vmatpush1.bf16.msra.mxu0 0
    %664 = vmatprep.mubr.bf16.mxu0 0
    %665 = vmatmul.mubr.bf16.gmra.mrb[0].mxu0 %v630
    %v666 = vpop.f32.mrb[0].mxu0
    %v667 = vadd.f32 %v611, %v666
    %v668 = vpop.f32.mrb[0].mxu0
    %v669 = vpop.f32.mrb[0].mxu0
    %v670 = vadd.f32 %v614, %v669
    %v671 = vpop.f32.mrb[0].mxu0
    %672 = vdwg.mxu0
    %v673 = vpack.c.bf16 %v549, %v546
    %s674 = scalar_lea.vmem [#allocation2], 32
    %v675 = vld [vmem:[%s674] sm:$0xf]
    %v676 = vld [vmem:[%s674 + $0x4] sm:$0xf]
    %v677 = vld [vmem:[%s674 + $0x8] sm:$0xf]
    %v678 = vld [vmem:[%s674 + $0xc] sm:$0xf]
    %v683 = vunpack.c.l.b16 %v675
    %v684 = vunpack.c.l.b16 %v676
    %v685 = vunpack.c.l.b16 %v677
    %v686 = vunpack.c.l.b16 %v678
    %v687 = vpack.c.b16 %v684, %v683
    %v688 = vpack.c.b16 %v686, %v685
    %v692 = vsel %vm51, %v673, 0
    %694 = vmatprep.subr.bf16.mxu0 0
    %695 = vmatpush1.bf16.msra.mxu0 %v687
    %696 = vmatprep.subr.bf16.mxu0 0
    %697 = vmatpush1.bf16.msra.mxu0 %v688
    %698 = vmatprep.subr.bf16.mxu0 0
    %699 = vmatpush1.bf16.msra.mxu0 0
    %700 = vmatprep.subr.bf16.mxu0 0
    %701 = vmatpush1.bf16.msra.mxu0 0
    %702 = vmatprep.subr.bf16.mxu0 0
    %703 = vmatpush1.bf16.msra.mxu0 0
    %704 = vmatprep.subr.bf16.mxu0 0
    %705 = vmatpush1.bf16.msra.mxu0 0
    %706 = vmatprep.subr.bf16.mxu0 0
    %707 = vmatpush1.bf16.msra.mxu0 0
    %708 = vmatprep.subr.bf16.mxu0 0
    %709 = vmatpush1.bf16.msra.mxu0 0
    %710 = vmatprep.subr.bf16.mxu0 0
    %711 = vmatpush1.bf16.msra.mxu0 0
    %712 = vmatprep.subr.bf16.mxu0 0
    %713 = vmatpush1.bf16.msra.mxu0 0
    %714 = vmatprep.subr.bf16.mxu0 0
    %715 = vmatpush1.bf16.msra.mxu0 0
    %716 = vmatprep.subr.bf16.mxu0 0
    %717 = vmatpush1.bf16.msra.mxu0 0
    %718 = vmatprep.subr.bf16.mxu0 0
    %719 = vmatpush1.bf16.msra.mxu0 0
    %720 = vmatprep.subr.bf16.mxu0 0
    %721 = vmatpush1.bf16.msra.mxu0 0
    %722 = vmatprep.subr.bf16.mxu0 0
    %723 = vmatpush1.bf16.msra.mxu0 0
    %724 = vmatprep.subr.bf16.mxu0 0
    %725 = vmatpush1.bf16.msra.mxu0 0
    %726 = vmatprep.mubr.bf16.mxu0 0
    %727 = vmatmul.mubr.bf16.gmra.mrb[0].mxu0 %v692
    %v728 = vpop.f32.mrb[0].mxu0
    %v729 = vadd.f32 0.0, %v728
    %v730 = vpop.f32.mrb[0].mxu0
    %v731 = vpop.f32.mrb[0].mxu0
    %v732 = vadd.f32 0.0, %v731
    %v733 = vpop.f32.mrb[0].mxu0
    %734 = vdwg.mxu0
    %v735 = vadd.f32 %v667, %v729
    %v736 = vadd.f32 %v670, %v732
    %v737 = vmax.f32 %v735, 0.0
    %v738 = vmax.f32 %v736, 0.0
    %v739 = vpack.c.bf16 %v738, %v737
    %s740 = scalar_lea.vmem %s3, 32
    %v741 = vld [vmem:[%s740] sm:$0xff]
    %v742 = vld [vmem:[%s740 + $0x8] sm:$0xff]
    %v743 = vld [vmem:[%s740 + $0x10] sm:$0xff]
    %v744 = vld [vmem:[%s740 + $0x18] sm:$0xff]
    %v749 = vunpack.c.l.b16 %v741
    %v750 = vunpack.c.h.b16 %v741
    %v751 = vunpack.c.l.b16 %v742
    %v752 = vunpack.c.h.b16 %v742
    %v753 = vunpack.c.l.b16 %v743
    %v754 = vunpack.c.h.b16 %v743
    %v755 = vunpack.c.l.b16 %v744
    %v756 = vunpack.c.h.b16 %v744
    %v757 = vpack.c.b16 %v751, %v749
    %v758 = vpack.c.b16 %v752, %v750
    %v759 = vpack.c.b16 %v755, %v753
    %v760 = vpack.c.b16 %v756, %v754
    %v766 = vsel %vm51, %v739, 0
    %768 = vmatprep.subr.bf16.mxu0 %v758
    %769 = vmatpush1.bf16.msra.mxu0 %v757
    %770 = vmatprep.subr.bf16.mxu0 %v760
    %771 = vmatpush1.bf16.msra.mxu0 %v759
    %772 = vmatprep.subr.bf16.mxu0 0
    %773 = vmatpush1.bf16.msra.mxu0 0
    %774 = vmatprep.subr.bf16.mxu0 0
    %775 = vmatpush1.bf16.msra.mxu0 0
    %776 = vmatprep.subr.bf16.mxu0 0
    %777 = vmatpush1.bf16.msra.mxu0 0
    %778 = vmatprep.subr.bf16.mxu0 0
    %779 = vmatpush1.bf16.msra.mxu0 0
    %780 = vmatprep.subr.bf16.mxu0 0
    %781 = vmatpush1.bf16.msra.mxu0 0
    %782 = vmatprep.subr.bf16.mxu0 0
    %783 = vmatpush1.bf16.msra.mxu0 0
    %784 = vmatprep.subr.bf16.mxu0 0
    %785 = vmatpush1.bf16.msra.mxu0 0
    %786 = vmatprep.subr.bf16.mxu0 0
    %787 = vmatpush1.bf16.msra.mxu0 0
    %788 = vmatprep.subr.bf16.mxu0 0
    %789 = vmatpush1.bf16.msra.mxu0 0
    %790 = vmatprep.subr.bf16.mxu0 0
    %791 = vmatpush1.bf16.msra.mxu0 0
    %792 = vmatprep.subr.bf16.mxu0 0
    %793 = vmatpush1.bf16.msra.mxu0 0
    %794 = vmatprep.subr.bf16.mxu0 0
    %795 = vmatpush1.bf16.msra.mxu0 0
    %796 = vmatprep.subr.bf16.mxu0 0
    %797 = vmatpush1.bf16.msra.mxu0 0
    %798 = vmatprep.subr.bf16.mxu0 0
    %799 = vmatpush1.bf16.msra.mxu0 0
    %800 = vmatprep.mubr.bf16.mxu0 0
    %801 = vmatmul.mubr.bf16.gmra.mrb[0].mxu0 %v766
    %v802 = vpop.f32.mrb[0].mxu0
    %v803 = vadd.f32 0.0, %v802
    %v804 = vpop.f32.mrb[0].mxu0
    %v805 = vadd.f32 0.0, %v804
    %v806 = vpop.f32.mrb[0].mxu0
    %v807 = vadd.f32 0.0, %v806
    %v808 = vpop.f32.mrb[0].mxu0
    %v809 = vadd.f32 0.0, %v808
    %810 = vdwg.mxu0
    %v815 = vunpack.c.l.b16 %v465
    %v816 = vunpack.c.h.b16 %v465
    %v817 = vunpack.c.l.b16 %v466
    %v818 = vunpack.c.h.b16 %v466
    %v819 = vunpack.c.l.b16 %v467
    %v820 = vunpack.c.h.b16 %v467
    %v821 = vunpack.c.l.b16 %v468
    %v822 = vunpack.c.h.b16 %v468
    %v823 = vpack.c.b16 %v817, %v815
    %v824 = vpack.c.b16 %v818, %v816
    %v825 = vpack.c.b16 %v821, %v819
    %v826 = vpack.c.b16 %v822, %v820
    %831 = vmatprep.subr.bf16.mxu0 %v824
    %832 = vmatpush1.bf16.msra.mxu0 %v823
    %833 = vmatprep.subr.bf16.mxu0 %v826
    %834 = vmatpush1.bf16.msra.mxu0 %v825
    %835 = vmatprep.subr.bf16.mxu0 0
    %836 = vmatpush1.bf16.msra.mxu0 0
    %837 = vmatprep.subr.bf16.mxu0 0
    %838 = vmatpush1.bf16.msra.mxu0 0
    %839 = vmatprep.subr.bf16.mxu0 0
    %840 = vmatpush1.bf16.msra.mxu0 0
    %841 = vmatprep.subr.bf16.mxu0 0
    %842 = vmatpush1.bf16.msra.mxu0 0
    %843 = vmatprep.subr.bf16.mxu0 0
    %844 = vmatpush1.bf16.msra.mxu0 0
    %845 = vmatprep.subr.bf16.mxu0 0
    %846 = vmatpush1.bf16.msra.mxu0 0
    %847 = vmatprep.subr.bf16.mxu0 0
    %848 = vmatpush1.bf16.msra.mxu0 0
    %849 = vmatprep.subr.bf16.mxu0 0
    %850 = vmatpush1.bf16.msra.mxu0 0
    %851 = vmatprep.subr.bf16.mxu0 0
    %852 = vmatpush1.bf16.msra.mxu0 0
    %853 = vmatprep.subr.bf16.mxu0 0
    %854 = vmatpush1.bf16.msra.mxu0 0
    %855 = vmatprep.subr.bf16.mxu0 0
    %856 = vmatpush1.bf16.msra.mxu0 0
    %857 = vmatprep.subr.bf16.mxu0 0
    %858 = vmatpush1.bf16.msra.mxu0 0
    %859 = vmatprep.subr.bf16.mxu0 0
    %860 = vmatpush1.bf16.msra.mxu0 0
    %861 = vmatprep.subr.bf16.mxu0 0
    %862 = vmatpush1.bf16.msra.mxu0 0
    %863 = vmatprep.mubr.bf16.mxu0 0
    %864 = vmatmul.mubr.bf16.gmra.mrb[0].mxu0 %v630
    %v865 = vpop.f32.mrb[0].mxu0
    %v866 = vadd.f32 %v803, %v865
    %v867 = vpop.f32.mrb[0].mxu0
    %v868 = vadd.f32 %v805, %v867
    %v869 = vpop.f32.mrb[0].mxu0
    %v870 = vadd.f32 %v807, %v869
    %v871 = vpop.f32.mrb[0].mxu0
    %v872 = vadd.f32 %v809, %v871
    %873 = vdwg.mxu0
    %v874 = vld [vmem:[%s4] sm:$0x3]
    %v876 = vlaneseq
    %v877 = vshrl.u32 %v876, 7
    %v878 = vsub.s32 0, %v877
    %v879 = vrot.slane %v874, %v878
    %v880 = vlaneseq
    %v881 = vshrl.u32 %v880, 7
    %v882 = vsub.s32 1, %v881
    %v883 = vrot.slane %v874, %v882
    %v886 = vadd.f32 %v866, %v879
    %v887 = vadd.f32 %v868, %v883
    %v888 = vadd.f32 %v870, %v879
    %v889 = vadd.f32 %v872, %v883
    %v890 = vmax.f32 %v886, 0.0
    %v891 = vmax.f32 %v887, 0.0
    %v892 = vmax.f32 %v888, 0.0
    %v893 = vmax.f32 %v889, 0.0
    %v894 = vld [vmem:[%s5] sm:$0x3]
    %v896 = vlaneseq
    %v897 = vshrl.u32 %v896, 7
    %v898 = vsub.s32 0, %v897
    %v899 = vrot.slane %v894, %v898
    %v900 = vlaneseq
    %v901 = vshrl.u32 %v900, 7
    %v902 = vsub.s32 1, %v901
    %v903 = vrot.slane %v894, %v902
    %v906 = vmul.f32 %v890, %v899
    %v907 = vmul.f32 %v891, %v903
    %v908 = vmul.f32 %v892, %v899
    %v909 = vmul.f32 %v893, %v903
    %v910 = vld [vmem:[%s6] sm:$0x3]
    %v912 = vlaneseq
    %v913 = vshrl.u32 %v912, 7
    %v914 = vsub.s32 0, %v913
    %v915 = vrot.slane %v910, %v914
    %v916 = vlaneseq
    %v917 = vshrl.u32 %v916, 7
    %v918 = vsub.s32 1, %v917
    %v919 = vrot.slane %v910, %v918
    %v922 = vadd.f32 %v906, %v915
    %v923 = vadd.f32 %v907, %v919
    %v924 = vadd.f32 %v908, %v915
    %v925 = vadd.f32 %v909, %v919
    %v926 = vpack.c.bf16 %v924, %v922
    %v927 = vpack.c.bf16 %v925, %v923
    %v928 = vld [vmem:[%s7] sm:$0xf]
    %v929 = vld [vmem:[%s7 + $0x4] sm:$0xf]
    %v930 = vld [vmem:[%s7 + $0x8] sm:$0xf]
    %v931 = vld [vmem:[%s7 + $0xc] sm:$0xf]
    %v932 = vld [vmem:[%s7 + $0x10] sm:$0xf]
    %v933 = vld [vmem:[%s7 + $0x14] sm:$0xf]
    %v934 = vld [vmem:[%s7 + $0x18] sm:$0xf]
    %v935 = vld [vmem:[%s7 + $0x1c] sm:$0xf]
    %v936 = vld [vmem:[%s7 + $0x20] sm:$0xf]
    %v937 = vld [vmem:[%s7 + $0x24] sm:$0xf]
    %v938 = vld [vmem:[%s7 + $0x28] sm:$0xf]
    %v939 = vld [vmem:[%s7 + $0x2c] sm:$0xf]
    %v940 = vld [vmem:[%s7 + $0x30] sm:$0xf]
    %v941 = vld [vmem:[%s7 + $0x34] sm:$0xf]
    %v942 = vld [vmem:[%s7 + $0x38] sm:$0xf]
    %v943 = vld [vmem:[%s7 + $0x3c] sm:$0xf]
    %v944 = vld [vmem:[%s7 + $0x40] sm:$0xf]
    %v945 = vld [vmem:[%s7 + $0x44] sm:$0xf]
    %v946 = vld [vmem:[%s7 + $0x48] sm:$0xf]
    %v947 = vld [vmem:[%s7 + $0x4c] sm:$0xf]
    %v948 = vld [vmem:[%s7 + $0x50] sm:$0xf]
    %v949 = vld [vmem:[%s7 + $0x54] sm:$0xf]
    %v950 = vld [vmem:[%s7 + $0x58] sm:$0xf]
    %v951 = vld [vmem:[%s7 + $0x5c] sm:$0xf]
    %v952 = vld [vmem:[%s7 + $0x60] sm:$0xf]
    %v953 = vld [vmem:[%s7 + $0x64] sm:$0xf]
    %v954 = vld [vmem:[%s7 + $0x68] sm:$0xf]
    %v955 = vld [vmem:[%s7 + $0x6c] sm:$0xf]
    %v956 = vld [vmem:[%s7 + $0x70] sm:$0xf]
    %v957 = vld [vmem:[%s7 + $0x74] sm:$0xf]
    %v958 = vld [vmem:[%s7 + $0x78] sm:$0xf]
    %v959 = vld [vmem:[%s7 + $0x7c] sm:$0xf]
    %v960 = vld [vmem:[%s8] sm:$0x1]
    %v962 = vlaneseq
    %v963 = vshrl.u32 %v962, 7
    %v964 = vsub.s32 0, %v963
    %v965 = vrot.slane %v960, %v964
    %v999 = vunpack.c.l.b16 %v928
    %v1000 = vunpack.c.l.b16 %v929
    %v1001 = vunpack.c.l.b16 %v930
    %v1002 = vunpack.c.l.b16 %v931
    %v1003 = vunpack.c.l.b16 %v932
    %v1004 = vunpack.c.l.b16 %v933
    %v1005 = vunpack.c.l.b16 %v934
    %v1006 = vunpack.c.l.b16 %v935
    %v1007 = vunpack.c.l.b16 %v936
    %v1008 = vunpack.c.l.b16 %v937
    %v1009 = vunpack.c.l.b16 %v938
    %v1010 = vunpack.c.l.b16 %v939
    %v1011 = vunpack.c.l.b16 %v940
    %v1012 = vunpack.c.l.b16 %v941
    %v1013 = vunpack.c.l.b16 %v942
    %v1014 = vunpack.c.l.b16 %v943
    %v1015 = vunpack.c.l.b16 %v944
    %v1016 = vunpack.c.l.b16 %v945
    %v1017 = vunpack.c.l.b16 %v946
    %v1018 = vunpack.c.l.b16 %v947
    %v1019 = vunpack.c.l.b16 %v948
    %v1020 = vunpack.c.l.b16 %v949
    %v1021 = vunpack.c.l.b16 %v950
    %v1022 = vunpack.c.l.b16 %v951
    %v1023 = vunpack.c.l.b16 %v952
    %v1024 = vunpack.c.l.b16 %v953
    %v1025 = vunpack.c.l.b16 %v954
    %v1026 = vunpack.c.l.b16 %v955
    %v1027 = vunpack.c.l.b16 %v956
    %v1028 = vunpack.c.l.b16 %v957
    %v1029 = vunpack.c.l.b16 %v958
    %v1030 = vunpack.c.l.b16 %v959
    %v1031 = vpack.c.b16 %v1000, %v999
    %v1032 = vpack.c.b16 %v1002, %v1001
    %v1033 = vpack.c.b16 %v1004, %v1003
    %v1034 = vpack.c.b16 %v1006, %v1005
    %v1035 = vpack.c.b16 %v1008, %v1007
    %v1036 = vpack.c.b16 %v1010, %v1009
    %v1037 = vpack.c.b16 %v1012, %v1011
    %v1038 = vpack.c.b16 %v1014, %v1013
    %v1039 = vpack.c.b16 %v1016, %v1015
    %v1040 = vpack.c.b16 %v1018, %v1017
    %v1041 = vpack.c.b16 %v1020, %v1019
    %v1042 = vpack.c.b16 %v1022, %v1021
    %v1043 = vpack.c.b16 %v1024, %v1023
    %v1044 = vpack.c.b16 %v1026, %v1025
    %v1045 = vpack.c.b16 %v1028, %v1027
    %v1046 = vpack.c.b16 %v1030, %v1029
    %1063 = vmatprep.subr.bf16.mxu0 0
    %1064 = vmatpush1.bf16.msra.mxu0 %v1031
    %1065 = vmatprep.subr.bf16.mxu0 0
    %1066 = vmatpush1.bf16.msra.mxu0 %v1032
    %1067 = vmatprep.subr.bf16.mxu0 0
    %1068 = vmatpush1.bf16.msra.mxu0 %v1033
    %1069 = vmatprep.subr.bf16.mxu0 0
    %1070 = vmatpush1.bf16.msra.mxu0 %v1034
    %1071 = vmatprep.subr.bf16.mxu0 0
    %1072 = vmatpush1.bf16.msra.mxu0 %v1035
    %1073 = vmatprep.subr.bf16.mxu0 0
    %1074 = vmatpush1.bf16.msra.mxu0 %v1036
    %1075 = vmatprep.subr.bf16.mxu0 0
    %1076 = vmatpush1.bf16.msra.mxu0 %v1037
    %1077 = vmatprep.subr.bf16.mxu0 0
    %1078 = vmatpush1.bf16.msra.mxu0 %v1038
    %1079 = vmatprep.subr.bf16.mxu0 0
    %1080 = vmatpush1.bf16.msra.mxu0 %v1039
    %1081 = vmatprep.subr.bf16.mxu0 0
    %1082 = vmatpush1.bf16.msra.mxu0 %v1040
    %1083 = vmatprep.subr.bf16.mxu0 0
    %1084 = vmatpush1.bf16.msra.mxu0 %v1041
    %1085 = vmatprep.subr.bf16.mxu0 0
    %1086 = vmatpush1.bf16.msra.mxu0 %v1042
    %1087 = vmatprep.subr.bf16.mxu0 0
    %1088 = vmatpush1.bf16.msra.mxu0 %v1043
    %1089 = vmatprep.subr.bf16.mxu0 0
    %1090 = vmatpush1.bf16.msra.mxu0 %v1044
    %1091 = vmatprep.subr.bf16.mxu0 0
    %1092 = vmatpush1.bf16.msra.mxu0 %v1045
    %1093 = vmatprep.subr.bf16.mxu0 0
    %1094 = vmatpush1.bf16.msra.mxu0 %v1046
    %1095 = vmatprep.mubr.bf16.mxu0 %v927
    %1096 = vmatmul.mubr.bf16.gmra.mrb[0].mxu0 %v926
    %v1097 = vpop.f32.mrb[0].mxu0
    %v1098 = vadd.f32 %v965, %v1097
    %v1099 = vpop.f32.mrb[0].mxu0
    %v1100 = vpop.f32.mrb[0].mxu0
    %v1101 = vadd.f32 %v965, %v1100
    %v1102 = vpop.f32.mrb[0].mxu0
    %1103 = vdwg.mxu0
    %vm1104 = vcmask 31744
    %v1105 = vsel %vm1104, %v1098, -inf
    %1106 = vmax.xlane.f32.xlu0 %v1105
    %v1107 = vpop.xlane.xlu0 %1106
    %v1108 = vsel %vm1104, %v1101, -inf
    %1109 = vmax.xlane.f32.xlu0 %v1108
    %v1110 = vpop.xlane.xlu0 %1109
    %v1111 = vsub.f32 %v1098, %v1107
    %v1112 = vsub.f32 %v1101, %v1110
    %v1113 = vmul.f32 %v1111, 1.442695
    %v1114 = vpow.pop %v1113
    %v1115 = vmul.f32 %v1112, 1.442695
    %v1116 = vpow.pop %v1115
    %v1117 = vsel %vm1104, %v1114, 0.0
    %1118 = vadd.xlane.f32.xlu0 %v1117
    %v1119 = vpop.xlane.xlu0 %1118
    %v1120 = vsel %vm1104, %v1116, 0.0
    %1121 = vadd.xlane.f32.xlu0 %v1120
    %v1122 = vpop.xlane.xlu0 %1121
    %v1123 = vrcp.pop %v1119
    %v1124 = vrcp.pop %v1122
    %v1125 = vmul.f32 %v1114, %v1123
    %v1126 = vmul.f32 %v1116, %v1124
    %1127 = vst.msk [vmem:[%s9] sm:$0xff] %vm1104, %v1125
    %1128 = vst.msk [vmem:[%s9 + $0x8] sm:$0xff] %vm1104, %v1126
    // Predicated region
    $region42: #{tpu_custom_call.1} parent=1 // pred_check
      _
    $region43: #{tpu_custom_call.1} parent=1 // pred_check_branch
      %1130 = sbr.rel (0) target = $region45
    $region44: #{tpu_custom_call.1} parent=1 // pred_region
      _
    $region45: #{tpu_custom_call.1} parent=1 // pred_fallthru
      _
    // Predicated region
    $region46: #{tpu_custom_call.1} parent=1 // pred_check
      _
    $region47: #{tpu_custom_call.1} parent=1 // pred_check_branch
      %1132 = sbr.rel (0) target = $region49
    $region48: #{tpu_custom_call.1} parent=1 // pred_region
      _
    $region49: #{tpu_custom_call.1} parent=1 // pred_fallthru
      _
    %1133 = vsyncpa [#allocation3], 1

</llo_original>
